<compile_context>
chip_gen: v7x
topology: tpu7x:2x2x1
jax: 0.10.0
libtpu: 0.0.40
codegen_flags: <defaults>
</compile_context>

<pallas_src>
import functools

import jax
import jax.numpy as jnp
from jax import lax
from jax.experimental import pallas as pl
from jax.experimental.pallas import tpu as pltpu


H1 = 256           # hidden width of first Linear/LayerNorm (fixed by the module)
H2 = 64            # hidden width of second Linear/LayerNorm
_LN_EPS = 1e-5     # PyTorch LayerNorm default eps
_LANES = 128
_NEG_INF = -1e30   # pad value for b3 -> exp() underflows to 0 in the softmax


def _round_up(v, m):
    return (v + m - 1) // m * m


def _choose_tile_n(n, cap):
    """Full N if it fits, else the largest 8-aligned divisor <= cap."""
    if n <= cap:
        return n
    for d in range(cap, 0, -1):
        if n % d == 0 and d % 8 == 0:
            return d
    return n  # fall back to one full-N tile (larger VMEM block, still correct)


def _choose_tile_b(b, tile_n, cap, min_rows=256):
    """Largest batch-divisor fitting cap rows; prefer >=2 parallel blocks
    (v7x dual TensorCores) when the MXU M dim stays reasonably filled."""
    limit = max(1, cap // tile_n)
    divs = [d for d in range(1, b + 1) if b % d == 0 and d <= limit]
    best = divs[-1]
    for d in reversed(divs):
        if b // d >= 2 and d * tile_n >= min_rows:
            return d
    return best


def _layer_norm(h, gamma, beta):
    # LayerNorm over the last (lane) dim; biased variance, matching PyTorch.
    mu = jnp.mean(h, axis=-1, keepdims=True)
    var = jnp.mean(jnp.square(h - mu), axis=-1, keepdims=True)
    return (h - mu) * lax.rsqrt(var + _LN_EPS) * gamma + beta


def _classreg_kernel(feats_ref, x_ref,
                     w1_ref, b1_ref, g1_ref, be1_ref,
                     w2_ref, b2_ref, g2_ref, be2_ref,
                     w3_ref, b3_ref,
                     out_ref, acc_ref, *, n_total, tile_b, tile_n):
    # feats_ref: (tile_b, tile_n, F) bf16      x_ref/out_ref: (1, tile_b, out_pad)
    # w1/w2/w3:  bf16 resident weights         b*/g*/be*: f32 (1, width)
    # acc_ref:   (tile_b, out_pad) f32 scratch (per-b row sums of the logits)
    t = pl.program_id(1)

    @pl.when(t == 0)
    def _():
        acc_ref[...] = jnp.zeros_like(acc_ref)

    # Fold batch into the matmul M dimension: one (tile_b*tile_n, F) slab.
    f = feats_ref[...].reshape(tile_b * tile_n, -1)                    # bf16

    h = jnp.dot(f, w1_ref[...], preferred_element_type=jnp.float32)   # (R, 256)
    h = h + b1_ref[...]
    h = jnp.maximum(_layer_norm(h, g1_ref[...], be1_ref[...]), 0.0)

    h = jnp.dot(h.astype(jnp.bfloat16), w2_ref[...],
                preferred_element_type=jnp.float32)                    # (R, 64)
    h = h + b2_ref[...]
    h = jnp.maximum(_layer_norm(h, g2_ref[...], be2_ref[...]), 0.0)

    # Final projection; b3 is folded into the finalize (summing tile_n
    # identical bias rows == tile_n * b3), so the hot loop stays pure MXU.
    logits = jnp.dot(h.astype(jnp.bfloat16), w3_ref[...],
                     preferred_element_type=jnp.float32)               # (R, out_pad)

    acc_ref[...] += jnp.sum(logits.reshape(tile_b, tile_n, -1), axis=1)

    @pl.when(t == pl.num_programs(1) - 1)
    def _():
        # mean over N, add b3 once; padded lanes carry -1e30 -> exp() == 0.
        mean_logits = acc_ref[...] * jnp.float32(1.0 / n_total) + b3_ref[...]
        m = jnp.max(mean_logits, axis=-1, keepdims=True)
        e = jnp.exp(mean_logits - m)
        p = e / jnp.sum(e, axis=-1, keepdims=True)                     # softmax
        out_ref[0] = (x_ref[0].astype(jnp.float32) + p).astype(out_ref.dtype)


def classreg_forward(x, feats, params, *, row_cap=1024):
    """
    x:     (B, out_dim) f32
    feats: (B, N, feat_dim) f32
    params: (w1 (F,256), b1 (256,), g1 (256,), be1 (256,),
             w2 (256,64), b2 (64,), g2 (64,), be2 (64,),
             w3 (64,out), b3 (out,))   -- Linear weights already (in, out).
    returns (B, out_dim)
    """
    B, N, F = feats.shape
    out_dim = x.shape[-1]
    out_pad = _round_up(out_dim, _LANES)

    tile_n = _choose_tile_n(N, row_cap)
    tile_b = _choose_tile_b(B, tile_n, row_cap)
    nb, nt = B // tile_b, N // tile_n

    w1, b1, g1, be1, w2, b2, g2, be2, w3, b3 = params

    # bf16 MXU inputs (halves the feats DMA), f32 LN / softmax params.
    feats_bf = feats.astype(jnp.bfloat16)
    w1_bf = w1.astype(jnp.bfloat16)
    w2_bf = w2.astype(jnp.bfloat16)
    # Lane-dense final projection: zero-pad w3 columns; pad b3 with -1e30 so
    # padded lanes drop out of the softmax without an explicit mask.
    w3p = jnp.zeros((H2, out_pad), jnp.float32).at[:, :out_dim].set(
        w3.astype(jnp.float32)).astype(jnp.bfloat16)
    b3p = jnp.full((1, out_pad), _NEG_INF, jnp.float32).at[0, :out_dim].set(
        b3.astype(jnp.float32))

    b1 = b1.reshape(1, H1).astype(jnp.float32)
    g1 = g1.reshape(1, H1).astype(jnp.float32)
    be1 = be1.reshape(1, H1).astype(jnp.float32)
    b2 = b2.reshape(1, H2).astype(jnp.float32)
    g2 = g2.reshape(1, H2).astype(jnp.float32)
    be2 = be2.reshape(1, H2).astype(jnp.float32)

    # Lane-dense residual input/output, reshaped so the block's second-to-last
    # dim is a full extent (keeps the (8,128) rule happy for any tile_b).
    x_pad = jnp.pad(x, ((0, 0), (0, out_pad - out_dim))).reshape(nb, tile_b, out_pad)

    kernel = functools.partial(_classreg_kernel, n_total=float(N),
                               tile_b=tile_b, tile_n=tile_n)
    const = lambda shape: pl.BlockSpec(shape, lambda b, t: (0, 0))

    out3 = pl.pallas_call(
        kernel,
        out_shape=jax.ShapeDtypeStruct((nb, tile_b, out_pad), x.dtype),
        grid=(nb, nt),
        in_specs=[
            pl.BlockSpec((tile_b, tile_n, F), lambda b, t: (b, t, 0)),   # feats tile
            pl.BlockSpec((1, tile_b, out_pad), lambda b, t: (b, 0, 0)),  # x rows
            const((F, H1)),        # w1
            const((1, H1)),        # b1
            const((1, H1)),        # gamma1
            const((1, H1)),        # beta1
            const((H1, H2)),       # w2
            const((1, H2)),        # b2
            const((1, H2)),        # gamma2
            const((1, H2)),        # beta2
            const((H2, out_pad)),  # w3 (zero-padded lanes)
            const((1, out_pad)),   # b3 (-1e30 padded lanes)
        ],
        out_specs=pl.BlockSpec((1, tile_b, out_pad), lambda b, t: (b, 0, 0)),
        scratch_shapes=[pltpu.VMEM((tile_b, out_pad), jnp.float32)],
        compiler_params=pltpu.CompilerParams(
            dimension_semantics=("parallel", "arbitrary"),
            vmem_limit_bytes=32 * 1024 * 1024),
    )(feats_bf, x_pad, w1_bf, b1, g1, be1, w2_bf, b2, g2, be2, w3p, b3p)

    return out3.reshape(B, out_pad)[:, :out_dim]


# --------------------------------- Reference -------------------------------- #
def _reference(x, feats, params):
    # Matches the kernel's numerics: bf16 matmul inputs, f32 accumulation,
    # f32 LayerNorm / softmax.
    w1, b1, g1, be1, w2, b2, g2, be2, w3, b3 = params
    bf = jnp.bfloat16

    def ln(h, g, bta):
        mu = jnp.mean(h, axis=-1, keepdims=True)
        var = jnp.mean(jnp.square(h - mu), axis=-1, keepdims=True)
        return (h - mu) / jnp.sqrt(var + _LN_EPS) * g + bta

    h = jnp.einsum("bnf,fh->bnh", feats.astype(bf), w1.astype(bf),
                   preferred_element_type=jnp.float32) + b1
    h = jax.nn.relu(ln(h, g1, be1))
    h = jnp.einsum("bnh,hk->bnk", h.astype(bf), w2.astype(bf),
                   preferred_element_type=jnp.float32) + b2
    h = jax.nn.relu(ln(h, g2, be2))
    logits = jnp.einsum("bnk,ko->bno", h.astype(bf), w3.astype(bf),
                        preferred_element_type=jnp.float32) + b3
    p = jax.nn.softmax(logits.mean(axis=1), axis=-1)
    return x + p


if __name__ == "__main__":
    B, N, feat_dim, out_dim = 2, 16, 32, 16

    key = jax.random.PRNGKey(0)
    ks = jax.random.split(key, 12)
    s = 0.1
    x = jax.random.normal(ks[0], (B, out_dim), dtype=jnp.float32)
    feats = jax.random.normal(ks[1], (B, N, feat_dim), dtype=jnp.float32)
    # Deterministic synthetic Linear/LayerNorm parameters (no checkpoint).
    w1 = jax.random.normal(ks[2], (feat_dim, H1), jnp.float32) * s
    b1 = jax.random.normal(ks[3], (H1,), jnp.float32) * s
    g1 = 1.0 + jax.random.normal(ks[4], (H1,), jnp.float32) * s
    be1 = jax.random.normal(ks[5], (H1,), jnp.float32) * s
    w2 = jax.random.normal(ks[6], (H1, H2), jnp.float32) * s
    b2 = jax.random.normal(ks[7], (H2,), jnp.float32) * s
    g2 = 1.0 + jax.random.normal(ks[8], (H2,), jnp.float32) * s
    be2 = jax.random.normal(ks[9], (H2,), jnp.float32) * s
    w3 = jax.random.normal(ks[10], (H2, out_dim), jnp.float32) * s
    b3 = jax.random.normal(ks[11], (out_dim,), jnp.float32) * s
    params = (w1, b1, g1, be1, w2, b2, g2, be2, w3, b3)

    ref = _reference(x, feats, params)

    # Default path: whole N in one tile, batch folded into the matmul rows.
    out = classreg_forward(x, feats, params)
    jax.block_until_ready(out)
    assert out.shape == (B, out_dim)
    assert jnp.allclose(out, ref, atol=5e-3, rtol=5e-3), (
        f"max abs err {jnp.max(jnp.abs(out - ref))}")

    # Small row cap: exercises the multi-tile accumulator / finalize path.
    out2 = classreg_forward(x, feats, params, row_cap=8)
    jax.block_until_ready(out2)
    assert jnp.allclose(out2, ref, atol=5e-3, rtol=5e-3), (
        f"max abs err {jnp.max(jnp.abs(out2 - ref))}")

    print("KERNEL_OK")
</pallas_src>

<mosaic_0001>
module attributes {stable_mosaic.version = 11 : i64} {
  func.func @_classreg_kernel(%arg0: i32, %arg1: i32, %arg2: memref<2x16x32xbf16, #tpu.memory_space<vmem>>, %arg3: memref<1x2x128xf32, #tpu.memory_space<vmem>>, %arg4: memref<32x256xbf16, #tpu.memory_space<vmem>>, %arg5: memref<1x256xf32, #tpu.memory_space<vmem>>, %arg6: memref<1x256xf32, #tpu.memory_space<vmem>>, %arg7: memref<1x256xf32, #tpu.memory_space<vmem>>, %arg8: memref<256x64xbf16, #tpu.memory_space<vmem>>, %arg9: memref<1x64xf32, #tpu.memory_space<vmem>>, %arg10: memref<1x64xf32, #tpu.memory_space<vmem>>, %arg11: memref<1x64xf32, #tpu.memory_space<vmem>>, %arg12: memref<64x128xbf16, #tpu.memory_space<vmem>>, %arg13: memref<1x128xf32, #tpu.memory_space<vmem>>, %arg14: memref<1x2x128xf32, #tpu.memory_space<vmem>>, %arg15: memref<2x128xf32, #tpu.memory_space<vmem>>) attributes {dimension_semantics = [#tpu.dimension_semantics<parallel>, #tpu.dimension_semantics<arbitrary>], iteration_bounds = array<i64: 1, 1>, scalar_prefetch = 0 : i64, scratch_operands = 1 : i64, tpu.core_type = #tpu.core_type<tc>, window_params = [{transform_indices = @transform_0, window_bounds = array<i64: 2, 16, 32>}, {transform_indices = @transform_1, window_bounds = array<i64: 1, 2, 128>}, {pipeline_mode = #tpu.pipeline_mode<synchronous>, transform_indices = @transform_2, window_bounds = array<i64: 32, 256>}, {pipeline_mode = #tpu.pipeline_mode<synchronous>, transform_indices = @transform_3, window_bounds = array<i64: 1, 256>}, {pipeline_mode = #tpu.pipeline_mode<synchronous>, transform_indices = @transform_4, window_bounds = array<i64: 1, 256>}, {pipeline_mode = #tpu.pipeline_mode<synchronous>, transform_indices = @transform_5, window_bounds = array<i64: 1, 256>}, {pipeline_mode = #tpu.pipeline_mode<synchronous>, transform_indices = @transform_6, window_bounds = array<i64: 256, 64>}, {pipeline_mode = #tpu.pipeline_mode<synchronous>, transform_indices = @transform_7, window_bounds = array<i64: 1, 64>}, {pipeline_mode = #tpu.pipeline_mode<synchronous>, transform_indices = @transform_8, window_bounds = array<i64: 1, 64>}, {pipeline_mode = #tpu.pipeline_mode<synchronous>, transform_indices = @transform_9, window_bounds = array<i64: 1, 64>}, {pipeline_mode = #tpu.pipeline_mode<synchronous>, transform_indices = @transform_10, window_bounds = array<i64: 64, 128>}, {pipeline_mode = #tpu.pipeline_mode<synchronous>, transform_indices = @transform_11, window_bounds = array<i64: 1, 128>}, {transform_indices = @transform_12, window_bounds = array<i64: 1, 2, 128>}]} {
    %c0_i32 = arith.constant 0 : i32
    %0 = arith.cmpi eq, %arg1, %c0_i32 : i32
    %1 = arith.extui %0 : i1 to i32
    %c0_i32_0 = arith.constant 0 : i32
    %2 = arith.cmpi ne, %1, %c0_i32_0 : i32
    scf.if %2 {
      %cst_42 = arith.constant 0.000000e+00 : f32
      %79 = vector.broadcast %cst_42 : f32 to vector<2x128xf32>
      %c0_43 = arith.constant 0 : index
      %c0_44 = arith.constant 0 : index
      %80 = vector.load %arg15[%c0_43, %c0_44] : memref<2x128xf32, #tpu.memory_space<vmem>>, vector<2x128xf32>
      tpu.vector_store %arg15[%c0_43, %c0_44], %79 {strides = array<i32>} : memref<2x128xf32, #tpu.memory_space<vmem>>, vector<2x128xf32>,
    } else {
    }
    %c0 = arith.constant 0 : index
    %c0_1 = arith.constant 0 : index
    %c0_2 = arith.constant 0 : index
    %3 = vector.load %arg2[%c0, %c0_1, %c0_2] : memref<2x16x32xbf16, #tpu.memory_space<vmem>>, vector<2x16x32xbf16>
    %4 = vector.shape_cast %3 : vector<2x16x32xbf16> to vector<32x32xbf16>
    %c0_3 = arith.constant 0 : index
    %c0_4 = arith.constant 0 : index
    %5 = vector.load %arg4[%c0_3, %c0_4] : memref<32x256xbf16, #tpu.memory_space<vmem>>, vector<32x256xbf16>
    %cst = arith.constant dense<0.000000e+00> : vector<32x256xf32>
    %6 = tpu.matmul %4, %5, %cst {dimension_numbers = #tpu.dot_dimension_numbers<[1], [0], [0], [1], [0, 0, 1, 1], [], []>} : vector<32x32xbf16>, vector<32x256xbf16>, vector<32x256xf32> -> vector<32x256xf32>
    %c0_5 = arith.constant 0 : index
    %c0_6 = arith.constant 0 : index
    %7 = vector.load %arg5[%c0_5, %c0_6] : memref<1x256xf32, #tpu.memory_space<vmem>>, vector<1x256xf32>
    %8 = vector.broadcast %7 : vector<1x256xf32> to vector<32x256xf32>
    %9 = arith.addf %6, %8 : vector<32x256xf32>
    %c0_7 = arith.constant 0 : index
    %c0_8 = arith.constant 0 : index
    %10 = vector.load %arg6[%c0_7, %c0_8] : memref<1x256xf32, #tpu.memory_space<vmem>>, vector<1x256xf32>
    %c0_9 = arith.constant 0 : index
    %c0_10 = arith.constant 0 : index
    %11 = vector.load %arg7[%c0_9, %c0_10] : memref<1x256xf32, #tpu.memory_space<vmem>>, vector<1x256xf32>
    %cst_11 = arith.constant dense<0.000000e+00> : vector<32xf32>
    %12 = vector.multi_reduction <add>, %9, %cst_11 [1] : vector<32x256xf32> to vector<32xf32>
    %13 = vector.shape_cast %12 : vector<32xf32> to vector<32x1xf32>
    %cst_12 = arith.constant 2.560000e+02 : f32
    %14 = vector.broadcast %cst_12 : f32 to vector<32x1xf32>
    %15 = arith.divf %13, %14 : vector<32x1xf32>
    %16 = vector.broadcast %15 : vector<32x1xf32> to vector<32x256xf32>
    %17 = arith.subf %9, %16 : vector<32x256xf32>
    %18 = arith.mulf %17, %17 : vector<32x256xf32>
    %cst_13 = arith.constant dense<0.000000e+00> : vector<32xf32>
    %19 = vector.multi_reduction <add>, %18, %cst_13 [1] : vector<32x256xf32> to vector<32xf32>
    %20 = vector.shape_cast %19 : vector<32xf32> to vector<32x1xf32>
    %cst_14 = arith.constant 2.560000e+02 : f32
    %21 = vector.broadcast %cst_14 : f32 to vector<32x1xf32>
    %22 = arith.divf %20, %21 : vector<32x1xf32>
    %23 = vector.broadcast %15 : vector<32x1xf32> to vector<32x256xf32>
    %24 = arith.subf %9, %23 : vector<32x256xf32>
    %cst_15 = arith.constant 9.99999974E-6 : f32
    %25 = vector.broadcast %cst_15 : f32 to vector<32x1xf32>
    %26 = arith.addf %22, %25 : vector<32x1xf32>
    %27 = math.rsqrt %26 : vector<32x1xf32>
    %28 = vector.broadcast %27 : vector<32x1xf32> to vector<32x256xf32>
    %29 = arith.mulf %24, %28 : vector<32x256xf32>
    %30 = vector.broadcast %10 : vector<1x256xf32> to vector<32x256xf32>
    %31 = arith.mulf %29, %30 : vector<32x256xf32>
    %32 = vector.broadcast %11 : vector<1x256xf32> to vector<32x256xf32>
    %33 = arith.addf %31, %32 : vector<32x256xf32>
    %cst_16 = arith.constant 0.000000e+00 : f32
    %34 = vector.broadcast %cst_16 : f32 to vector<32x256xf32>
    %35 = arith.maximumf %33, %34 : vector<32x256xf32>
    %36 = arith.truncf %35 : vector<32x256xf32> to vector<32x256xbf16>
    %c0_17 = arith.constant 0 : index
    %c0_18 = arith.constant 0 : index
    %37 = vector.load %arg8[%c0_17, %c0_18] : memref<256x64xbf16, #tpu.memory_space<vmem>>, vector<256x64xbf16>
    %cst_19 = arith.constant dense<0.000000e+00> : vector<32x64xf32>
    %38 = tpu.matmul %36, %37, %cst_19 {dimension_numbers = #tpu.dot_dimension_numbers<[1], [0], [0], [1], [0, 0, 1, 1], [], []>} : vector<32x256xbf16>, vector<256x64xbf16>, vector<32x64xf32> -> vector<32x64xf32>
    %c0_20 = arith.constant 0 : index
    %c0_21 = arith.constant 0 : index
    %39 = vector.load %arg9[%c0_20, %c0_21] : memref<1x64xf32, #tpu.memory_space<vmem>>, vector<1x64xf32>
    %40 = vector.broadcast %39 : vector<1x64xf32> to vector<32x64xf32>
    %41 = arith.addf %38, %40 : vector<32x64xf32>
    %c0_22 = arith.constant 0 : index
    %c0_23 = arith.constant 0 : index
    %42 = vector.load %arg10[%c0_22, %c0_23] : memref<1x64xf32, #tpu.memory_space<vmem>>, vector<1x64xf32>
    %c0_24 = arith.constant 0 : index
    %c0_25 = arith.constant 0 : index
    %43 = vector.load %arg11[%c0_24, %c0_25] : memref<1x64xf32, #tpu.memory_space<vmem>>, vector<1x64xf32>
    %cst_26 = arith.constant dense<0.000000e+00> : vector<32xf32>
    %44 = vector.multi_reduction <add>, %41, %cst_26 [1] : vector<32x64xf32> to vector<32xf32>
    %45 = vector.shape_cast %44 : vector<32xf32> to vector<32x1xf32>
    %cst_27 = arith.constant 6.400000e+01 : f32
    %46 = vector.broadcast %cst_27 : f32 to vector<32x1xf32>
    %47 = arith.divf %45, %46 : vector<32x1xf32>
    %48 = vector.broadcast %47 : vector<32x1xf32> to vector<32x64xf32>
    %49 = arith.subf %41, %48 : vector<32x64xf32>
    %50 = arith.mulf %49, %49 : vector<32x64xf32>
    %cst_28 = arith.constant dense<0.000000e+00> : vector<32xf32>
    %51 = vector.multi_reduction <add>, %50, %cst_28 [1] : vector<32x64xf32> to vector<32xf32>
    %52 = vector.shape_cast %51 : vector<32xf32> to vector<32x1xf32>
    %cst_29 = arith.constant 6.400000e+01 : f32
    %53 = vector.broadcast %cst_29 : f32 to vector<32x1xf32>
    %54 = arith.divf %52, %53 : vector<32x1xf32>
    %55 = vector.broadcast %47 : vector<32x1xf32> to vector<32x64xf32>
    %56 = arith.subf %41, %55 : vector<32x64xf32>
    %cst_30 = arith.constant 9.99999974E-6 : f32
    %57 = vector.broadcast %cst_30 : f32 to vector<32x1xf32>
    %58 = arith.addf %54, %57 : vector<32x1xf32>
    %59 = math.rsqrt %58 : vector<32x1xf32>
    %60 = vector.broadcast %59 : vector<32x1xf32> to vector<32x64xf32>
    %61 = arith.mulf %56, %60 : vector<32x64xf32>
    %62 = vector.broadcast %42 : vector<1x64xf32> to vector<32x64xf32>
    %63 = arith.mulf %61, %62 : vector<32x64xf32>
    %64 = vector.broadcast %43 : vector<1x64xf32> to vector<32x64xf32>
    %65 = arith.addf %63, %64 : vector<32x64xf32>
    %cst_31 = arith.constant 0.000000e+00 : f32
    %66 = vector.broadcast %cst_31 : f32 to vector<32x64xf32>
    %67 = arith.maximumf %65, %66 : vector<32x64xf32>
    %68 = arith.truncf %67 : vector<32x64xf32> to vector<32x64xbf16>
    %c0_32 = arith.constant 0 : index
    %c0_33 = arith.constant 0 : index
    %69 = vector.load %arg12[%c0_32, %c0_33] : memref<64x128xbf16, #tpu.memory_space<vmem>>, vector<64x128xbf16>
    %cst_34 = arith.constant dense<0.000000e+00> : vector<32x128xf32>
    %70 = tpu.matmul %68, %69, %cst_34 {dimension_numbers = #tpu.dot_dimension_numbers<[1], [0], [0], [1], [0, 0, 1, 1], [], []>} : vector<32x64xbf16>, vector<64x128xbf16>, vector<32x128xf32> -> vector<32x128xf32>
    %c0_35 = arith.constant 0 : index
    %c0_36 = arith.constant 0 : index
    %71 = vector.load %arg15[%c0_35, %c0_36] : memref<2x128xf32, #tpu.memory_space<vmem>>, vector<2x128xf32>
    %72 = vector.shape_cast %70 : vector<32x128xf32> to vector<2x16x128xf32>
    %cst_37 = arith.constant dense<0.000000e+00> : vector<2x128xf32>
    %73 = vector.multi_reduction <add>, %72, %cst_37 [1] : vector<2x16x128xf32> to vector<2x128xf32>
    %74 = arith.addf %71, %73 : vector<2x128xf32>
    %c0_38 = arith.constant 0 : index
    %c0_39 = arith.constant 0 : index
    %75 = vector.load %arg15[%c0_38, %c0_39] : memref<2x128xf32, #tpu.memory_space<vmem>>, vector<2x128xf32>
    tpu.vector_store %arg15[%c0_38, %c0_39], %74 {strides = array<i32>} : memref<2x128xf32, #tpu.memory_space<vmem>>, vector<2x128xf32>,
    %c0_i32_40 = arith.constant 0 : i32
    %76 = arith.cmpi eq, %arg1, %c0_i32_40 : i32
    %77 = arith.extui %76 : i1 to i32
    %c0_i32_41 = arith.constant 0 : i32
    %78 = arith.cmpi ne, %77, %c0_i32_41 : i32
    scf.if %78 {
      %c0_42 = arith.constant 0 : index
      %c0_43 = arith.constant 0 : index
      %79 = vector.load %arg15[%c0_42, %c0_43] : memref<2x128xf32, #tpu.memory_space<vmem>>, vector<2x128xf32>
      %cst_44 = arith.constant 6.250000e-02 : f32
      %80 = vector.broadcast %cst_44 : f32 to vector<2x128xf32>
      %81 = arith.mulf %79, %80 : vector<2x128xf32>
      %c0_45 = arith.constant 0 : index
      %c0_46 = arith.constant 0 : index
      %82 = vector.load %arg13[%c0_45, %c0_46] : memref<1x128xf32, #tpu.memory_space<vmem>>, vector<1x128xf32>
      %83 = vector.broadcast %82 : vector<1x128xf32> to vector<2x128xf32>
      %84 = arith.addf %81, %83 : vector<2x128xf32>
      %cst_47 = arith.constant dense<0xFF800000> : vector<2xf32>
      %85 = vector.multi_reduction <maximumf>, %84, %cst_47 [1] : vector<2x128xf32> to vector<2xf32>
      %86 = vector.shape_cast %85 : vector<2xf32> to vector<2x1xf32>
      %87 = vector.broadcast %86 : vector<2x1xf32> to vector<2x128xf32>
      %88 = arith.subf %84, %87 : vector<2x128xf32>
      %89 = math.exp %88 : vector<2x128xf32>
      %cst_48 = arith.constant dense<0.000000e+00> : vector<2xf32>
      %90 = vector.multi_reduction <add>, %89, %cst_48 [1] : vector<2x128xf32> to vector<2xf32>
      %91 = vector.shape_cast %90 : vector<2xf32> to vector<2x1xf32>
      %92 = vector.broadcast %91 : vector<2x1xf32> to vector<2x128xf32>
      %93 = arith.divf %89, %92 : vector<2x128xf32>
      %c0_49 = arith.constant 0 : index
      %c0_50 = arith.constant 0 : index
      %c0_51 = arith.constant 0 : index
      %94 = vector.load %arg3[%c0_49, %c0_50, %c0_51] : memref<1x2x128xf32, #tpu.memory_space<vmem>>, vector<1x2x128xf32>
      %95 = vector.shape_cast %94 : vector<1x2x128xf32> to vector<2x128xf32>
      %96 = arith.addf %95, %93 : vector<2x128xf32>
      %c0_52 = arith.constant 0 : index
      %c0_53 = arith.constant 0 : index
      %c0_54 = arith.constant 0 : index
      %97 = vector.load %arg14[%c0_52, %c0_53, %c0_54] : memref<1x2x128xf32, #tpu.memory_space<vmem>>, vector<1x2x128xf32>
      %98 = vector.shape_cast %97 : vector<1x2x128xf32> to vector<2x128xf32>
      %99 = vector.shape_cast %96 : vector<2x128xf32> to vector<1x2x128xf32>
      tpu.vector_store %arg14[%c0_52, %c0_53, %c0_54], %99 {strides = array<i32>} : memref<1x2x128xf32, #tpu.memory_space<vmem>>, vector<1x2x128xf32>,
    } else {
    }
    return
  }
  func.func @transform_0(%arg0: i32, %arg1: i32) -> (i32, i32, i32) {
    %c0_i32 = arith.constant 0 : i32
    %c0_i32_0 = arith.constant 0 : i32
    return %arg0, %arg1, %c0_i32 : i32, i32, i32
  }
  func.func @transform_1(%arg0: i32, %arg1: i32) -> (i32, i32, i32) {
    %c0_i32 = arith.constant 0 : i32
    %c0_i32_0 = arith.constant 0 : i32
    %c0_i32_1 = arith.constant 0 : i32
    return %arg0, %c0_i32, %c0_i32_0 : i32, i32, i32
  }
  func.func @transform_2(%arg0: i32, %arg1: i32) -> (i32, i32) {
    %c0_i32 = arith.constant 0 : i32
    %c0_i32_0 = arith.constant 0 : i32
    %c0_i32_1 = arith.constant 0 : i32
    return %c0_i32, %c0_i32_0 : i32, i32
  }
  func.func @transform_3(%arg0: i32, %arg1: i32) -> (i32, i32) {
    %c0_i32 = arith.constant 0 : i32
    %c0_i32_0 = arith.constant 0 : i32
    %c0_i32_1 = arith.constant 0 : i32
    return %c0_i32, %c0_i32_0 : i32, i32
  }
  func.func @transform_4(%arg0: i32, %arg1: i32) -> (i32, i32) {
    %c0_i32 = arith.constant 0 : i32
    %c0_i32_0 = arith.constant 0 : i32
    %c0_i32_1 = arith.constant 0 : i32
    return %c0_i32, %c0_i32_0 : i32, i32
  }
  func.func @transform_5(%arg0: i32, %arg1: i32) -> (i32, i32) {
    %c0_i32 = arith.constant 0 : i32
    %c0_i32_0 = arith.constant 0 : i32
    %c0_i32_1 = arith.constant 0 : i32
    return %c0_i32, %c0_i32_0 : i32, i32
  }
  func.func @transform_6(%arg0: i32, %arg1: i32) -> (i32, i32) {
    %c0_i32 = arith.constant 0 : i32
    %c0_i32_0 = arith.constant 0 : i32
    %c0_i32_1 = arith.constant 0 : i32
    return %c0_i32, %c0_i32_0 : i32, i32
  }
  func.func @transform_7(%arg0: i32, %arg1: i32) -> (i32, i32) {
    %c0_i32 = arith.constant 0 : i32
    %c0_i32_0 = arith.constant 0 : i32
    %c0_i32_1 = arith.constant 0 : i32
    return %c0_i32, %c0_i32_0 : i32, i32
  }
  func.func @transform_8(%arg0: i32, %arg1: i32) -> (i32, i32) {
    %c0_i32 = arith.constant 0 : i32
    %c0_i32_0 = arith.constant 0 : i32
    %c0_i32_1 = arith.constant 0 : i32
    return %c0_i32, %c0_i32_0 : i32, i32
  }
  func.func @transform_9(%arg0: i32, %arg1: i32) -> (i32, i32) {
    %c0_i32 = arith.constant 0 : i32
    %c0_i32_0 = arith.constant 0 : i32
    %c0_i32_1 = arith.constant 0 : i32
    return %c0_i32, %c0_i32_0 : i32, i32
  }
  func.func @transform_10(%arg0: i32, %arg1: i32) -> (i32, i32) {
    %c0_i32 = arith.constant 0 : i32
    %c0_i32_0 = arith.constant 0 : i32
    %c0_i32_1 = arith.constant 0 : i32
    return %c0_i32, %c0_i32_0 : i32, i32
  }
  func.func @transform_11(%arg0: i32, %arg1: i32) -> (i32, i32) {
    %c0_i32 = arith.constant 0 : i32
    %c0_i32_0 = arith.constant 0 : i32
    %c0_i32_1 = arith.constant 0 : i32
    return %c0_i32, %c0_i32_0 : i32, i32
  }
  func.func @transform_12(%arg0: i32, %arg1: i32) -> (i32, i32, i32) {
    %c0_i32 = arith.constant 0 : i32
    %c0_i32_0 = arith.constant 0 : i32
    %c0_i32_1 = arith.constant 0 : i32
    return %arg0, %c0_i32, %c0_i32_0 : i32, i32, i32
  }
}

</mosaic_0001>

<llo_original>
// kernel: tpu_custom_call.1
$region0: #{tpu_custom_call.1}
  #allocation0 [shape = 'u32[]', space=smem, size = 0x4, offset = 0x4, fixed_abs, tag = 'smem constant byte address 0x4 - core index']
  #allocation1 [shape = 'u32[144,128]{1,0:T(1,128)}', space=vmem, size = 0x12000, scoped, tag = 'internal scratch']
  #allocation2 [shape = 'f32[2,128]{1,0:T(2,128)}', space=vmem, size = 0x400, scoped, tag = 'scratch operand']
  %s0 = inlined_call_operand.vmem [shape: bf16[2,16,32], index: 0, kind: input, shape index: {}]
  %s1 = inlined_call_operand.vmem [shape: f32[1,2,128], index: 1, kind: input, shape index: {}]
  %s2 = inlined_call_operand.vmem [shape: bf16[32,256], index: 2, kind: input, shape index: {}]
  %s3 = inlined_call_operand.vmem [shape: f32[1,256], index: 3, kind: input, shape index: {}]
  %s4 = inlined_call_operand.vmem [shape: f32[1,256], index: 4, kind: input, shape index: {}]
  %s5 = inlined_call_operand.vmem [shape: f32[1,256], index: 5, kind: input, shape index: {}]
  %s6 = inlined_call_operand.vmem [shape: bf16[256,64], index: 6, kind: input, shape index: {}]
  %s7 = inlined_call_operand.vmem [shape: f32[1,64], index: 7, kind: input, shape index: {}]
  %s8 = inlined_call_operand.vmem [shape: f32[1,64], index: 8, kind: input, shape index: {}]
  %s9 = inlined_call_operand.vmem [shape: f32[1,64], index: 9, kind: input, shape index: {}]
  %s10 = inlined_call_operand.vmem [shape: bf16[64,128], index: 10, kind: input, shape index: {}]
  %s11 = inlined_call_operand.vmem [shape: f32[1,128], index: 11, kind: input, shape index: {}]
  %s12 = inlined_call_operand.hbm [shape: f32[1,2,128], index: 12, kind: output, shape index: {}]
  %s13 = sld [smem:[#allocation0]]
  $region66: #{tpu_custom_call.1} parent=0
    _
  %s15 = ssub.s32 1, %s13
  %s16 = scalar_select 0, %s15, %s13
  $region1: #{tpu_custom_call.1} parent=0
    #allocation3 [shape = 'u8[1024]{0}', space=vmem, size = 0x400, scoped, tag = 'output window, operand 0, single buffered']
    #allocation4 [shape = 's32[1]{0}', space=sflag, size = 0x4, scoped, tag = 'scoped memory for tpu_custom_call.1']
    %17 = vsyncpa [#allocation4], 0
    // Predicated region
    $region2: #{tpu_custom_call.1} parent=1 // pred_check
      _
    $region3: #{tpu_custom_call.1} parent=1 // pred_check_branch
      %19 = sbr.rel (0) target = $region5
    $region4: #{tpu_custom_call.1} parent=1 // pred_region
      _
    $region5: #{tpu_custom_call.1} parent=1 // pred_fallthru
      _
    // Predicated region
    $region6: #{tpu_custom_call.1} parent=1 // pred_check
      _
    $region7: #{tpu_custom_call.1} parent=1 // pred_check_branch
      %21 = sbr.rel (0) target = $region9
    $region8: #{tpu_custom_call.1} parent=1 // pred_region
      _
    $region9: #{tpu_custom_call.1} parent=1 // pred_fallthru
      _
    // Predicated region
    $region10: #{tpu_custom_call.1} parent=1 // pred_check
      _
    $region11: #{tpu_custom_call.1} parent=1 // pred_check_branch
      %23 = sbr.rel (0) target = $region13
    $region12: #{tpu_custom_call.1} parent=1 // pred_region
      _
    $region13: #{tpu_custom_call.1} parent=1 // pred_fallthru
      _
    // Predicated region
    $region14: #{tpu_custom_call.1} parent=1 // pred_check
      _
    $region15: #{tpu_custom_call.1} parent=1 // pred_check_branch
      %25 = sbr.rel (0) target = $region17
    $region16: #{tpu_custom_call.1} parent=1 // pred_region
      _
    $region17: #{tpu_custom_call.1} parent=1 // pred_fallthru
      _
    // Predicated region
    $region18: #{tpu_custom_call.1} parent=1 // pred_check
      _
    $region19: #{tpu_custom_call.1} parent=1 // pred_check_branch
      %27 = sbr.rel (0) target = $region21
    $region20: #{tpu_custom_call.1} parent=1 // pred_region
      _
    $region21: #{tpu_custom_call.1} parent=1 // pred_fallthru
      _
    // Predicated region
    $region22: #{tpu_custom_call.1} parent=1 // pred_check
      _
    $region23: #{tpu_custom_call.1} parent=1 // pred_check_branch
      %29 = sbr.rel (0) target = $region25
    $region24: #{tpu_custom_call.1} parent=1 // pred_region
      _
    $region25: #{tpu_custom_call.1} parent=1 // pred_fallthru
      _
    // Predicated region
    $region26: #{tpu_custom_call.1} parent=1 // pred_check
      _
    $region27: #{tpu_custom_call.1} parent=1 // pred_check_branch
      %31 = sbr.rel (0) target = $region29
    $region28: #{tpu_custom_call.1} parent=1 // pred_region
      _
    $region29: #{tpu_custom_call.1} parent=1 // pred_fallthru
      _
    // Predicated region
    $region30: #{tpu_custom_call.1} parent=1 // pred_check
      _
    $region31: #{tpu_custom_call.1} parent=1 // pred_check_branch
      %33 = sbr.rel (0) target = $region33
    $region32: #{tpu_custom_call.1} parent=1 // pred_region
      _
    $region33: #{tpu_custom_call.1} parent=1 // pred_fallthru
      _
    // Predicated region
    $region34: #{tpu_custom_call.1} parent=1 // pred_check
      _
    $region35: #{tpu_custom_call.1} parent=1 // pred_check_branch
      %35 = sbr.rel (0) target = $region37
    $region36: #{tpu_custom_call.1} parent=1 // pred_region
      _
    $region37: #{tpu_custom_call.1} parent=1 // pred_fallthru
      _
    // Predicated region
    $region38: #{tpu_custom_call.1} parent=1 // pred_check
      _
    $region39: #{tpu_custom_call.1} parent=1 // pred_check_branch
      %37 = sbr.rel (0) target = $region41
    $region40: #{tpu_custom_call.1} parent=1 // pred_region
      _
    $region41: #{tpu_custom_call.1} parent=1 // pred_fallthru
      _
    // Predicated region
    $region42: #{tpu_custom_call.1} parent=1 // pred_check
      _
    $region43: #{tpu_custom_call.1} parent=1 // pred_check_branch
      %39 = sbr.rel (0) target = $region45
    $region44: #{tpu_custom_call.1} parent=1 // pred_region
      _
    $region45: #{tpu_custom_call.1} parent=1 // pred_fallthru
      _
    // Predicated region
    $region46: #{tpu_custom_call.1} parent=1 // pred_check
      _
    $region47: #{tpu_custom_call.1} parent=1 // pred_check_branch
      %41 = sbr.rel (0) target = $region49
    $region48: #{tpu_custom_call.1} parent=1 // pred_region
      _
    $region49: #{tpu_custom_call.1} parent=1 // pred_fallthru
      _
    %p43 = scmp.eq.s32.totalorder 0, 0
    // Predicated region
    $region50: #{tpu_custom_call.1} parent=1 // pred_check
      %p44 = pneg %p43
    $region51: #{tpu_custom_call.1} parent=1 // pred_check_branch
      %46 = sbr.rel (%p44) target = $region53
    $region52: #{tpu_custom_call.1} parent=1 // pred_region
      %47 = vst [vmem:[#allocation2] sm:$0x3] 0.0
    $region53: #{tpu_custom_call.1} parent=1 // pred_fallthru
      _
    %v48 = vld [vmem:[%s0] sm:$0xf]
    %v49 = vld [vmem:[%s0 + $0x4] sm:$0xf]
    %v50 = vld [vmem:[%s0 + $0x8] sm:$0xf]
    %v51 = vld [vmem:[%s0 + $0xc] sm:$0xf]
    %v52 = vld [vmem:[%s2] sm:$0xff]
    %v53 = vld [vmem:[%s2 + $0x8] sm:$0xff]
    %v54 = vld [vmem:[%s2 + $0x10] sm:$0xff]
    %v55 = vld [vmem:[%s2 + $0x18] sm:$0xff]
    %v56 = vld [vmem:[%s3] sm:$0x3]
    %v58 = vlaneseq
    %v59 = vshrl.u32 %v58, 7
    %v60 = vsub.s32 0, %v59
    %v61 = vrot.slane %v56, %v60
    %v62 = vlaneseq
    %v63 = vshrl.u32 %v62, 7
    %v64 = vsub.s32 1, %v63
    %v65 = vrot.slane %v56, %v64
    %v72 = vunpack.c.l.b16 %v48
    %v73 = vunpack.c.l.b16 %v49
    %v74 = vunpack.c.l.b16 %v50
    %v75 = vunpack.c.l.b16 %v51
    %v76 = vpack.c.b16 %v73, %v72
    %v77 = vpack.c.b16 %v75, %v74
    %v82 = vunpack.c.l.b16 %v52
    %v83 = vunpack.c.h.b16 %v52
    %v84 = vunpack.c.l.b16 %v53
    %v85 = vunpack.c.h.b16 %v53
    %v86 = vunpack.c.l.b16 %v54
    %v87 = vunpack.c.h.b16 %v54
    %v88 = vunpack.c.l.b16 %v55
    %v89 = vunpack.c.h.b16 %v55
    %v90 = vpack.c.b16 %v84, %v82
    %v91 = vpack.c.b16 %v85, %v83
    %v92 = vpack.c.b16 %v88, %v86
    %v93 = vpack.c.b16 %v89, %v87
    %vm98 = vcmask 261120
    %v100 = vsel %vm98, %v76, 0
    %v103 = vsel %vm98, %v77, 0
    %105 = vmatprep.subr.bf16.mxu0 %v91
    %106 = vmatpush1.bf16.msra.mxu0 %v90
    %107 = vmatprep.subr.bf16.mxu0 %v93
    %108 = vmatpush1.bf16.msra.mxu0 %v92
    %109 = vmatprep.subr.bf16.mxu0 0
    %110 = vmatpush1.bf16.msra.mxu0 0
    %111 = vmatprep.subr.bf16.mxu0 0
    %112 = vmatpush1.bf16.msra.mxu0 0
    %113 = vmatprep.subr.bf16.mxu0 0
    %114 = vmatpush1.bf16.msra.mxu0 0
    %115 = vmatprep.subr.bf16.mxu0 0
    %116 = vmatpush1.bf16.msra.mxu0 0
    %117 = vmatprep.subr.bf16.mxu0 0
    %118 = vmatpush1.bf16.msra.mxu0 0
    %119 = vmatprep.subr.bf16.mxu0 0
    %120 = vmatpush1.bf16.msra.mxu0 0
    %121 = vmatprep.subr.bf16.mxu0 0
    %122 = vmatpush1.bf16.msra.mxu0 0
    %123 = vmatprep.subr.bf16.mxu0 0
    %124 = vmatpush1.bf16.msra.mxu0 0
    %125 = vmatprep.subr.bf16.mxu0 0
    %126 = vmatpush1.bf16.msra.mxu0 0
    %127 = vmatprep.subr.bf16.mxu0 0
    %128 = vmatpush1.bf16.msra.mxu0 0
    %129 = vmatprep.subr.bf16.mxu0 0
    %130 = vmatpush1.bf16.msra.mxu0 0
    %131 = vmatprep.subr.bf16.mxu0 0
    %132 = vmatpush1.bf16.msra.mxu0 0
    %133 = vmatprep.subr.bf16.mxu0 0
    %134 = vmatpush1.bf16.msra.mxu0 0
    %135 = vmatprep.subr.bf16.mxu0 0
    %136 = vmatpush1.bf16.msra.mxu0 0
    %137 = vmatprep.mubr.bf16.mxu0 0
    %138 = vmatmul.mubr.bf16.gmra.mrb[0].mxu0 %v100
    %v139 = vpop.f32.mrb[0].mxu0
    %v140 = vadd.f32 %v61, %v139
    %v141 = vpop.f32.mrb[0].mxu0
    %v142 = vadd.f32 %v65, %v141
    %v143 = vpop.f32.mrb[0].mxu0
    %v144 = vadd.f32 %v61, %v143
    %v145 = vpop.f32.mrb[0].mxu0
    %v146 = vadd.f32 %v65, %v145
    %147 = vmatprep.mubr.bf16.mxu0 0
    %148 = vmatmul.mubr.bf16.gmra.mrb[0].mxu0 %v103
    %v149 = vpop.f32.mrb[0].mxu0
    %v150 = vadd.f32 %v61, %v149
    %v151 = vpop.f32.mrb[0].mxu0
    %v152 = vadd.f32 %v65, %v151
    %v153 = vpop.f32.mrb[0].mxu0
    %v154 = vadd.f32 %v61, %v153
    %v155 = vpop.f32.mrb[0].mxu0
    %v156 = vadd.f32 %v65, %v155
    %157 = vdwg.mxu0
    %v158 = vld [vmem:[%s4] sm:$0x3]
    %v159 = vld [vmem:[%s5] sm:$0x3]
    %v160 = vadd.f32 %v140, %v142
    %161 = vadd.xlane.f32.xlu0 %v160
    %v162 = vpop.xlane.xlu0 %161
    %v163 = vadd.f32 %v144, %v146
    %164 = vadd.xlane.f32.xlu0 %v163
    %v165 = vpop.xlane.xlu0 %164
    %v166 = vadd.f32 %v150, %v152
    %167 = vadd.xlane.f32.xlu0 %v166
    %v168 = vpop.xlane.xlu0 %167
    %v169 = vadd.f32 %v154, %v156
    %170 = vadd.xlane.f32.xlu0 %v169
    %v171 = vpop.xlane.xlu0 %170
    %v172 = vrcp.pop 256.0
    %v173 = vmul.f32 %v162, %v172
    %v174 = vmul.f32 %v165, %v172
    %v175 = vmul.f32 %v168, %v172
    %v176 = vmul.f32 %v171, %v172
    %v177 = vsub.f32 %v140, %v173
    %v178 = vsub.f32 %v142, %v173
    %v179 = vsub.f32 %v144, %v174
    %v180 = vsub.f32 %v146, %v174
    %v181 = vsub.f32 %v150, %v175
    %v182 = vsub.f32 %v152, %v175
    %v183 = vsub.f32 %v154, %v176
    %v184 = vsub.f32 %v156, %v176
    %v185 = vmul.f32 %v177, %v177
    %v186 = vmul.f32 %v178, %v178
    %v187 = vmul.f32 %v179, %v179
    %v188 = vmul.f32 %v180, %v180
    %v189 = vmul.f32 %v181, %v181
    %v190 = vmul.f32 %v182, %v182
    %v191 = vmul.f32 %v183, %v183
    %v192 = vmul.f32 %v184, %v184
    %v193 = vadd.f32 %v185, %v186
    %194 = vadd.xlane.f32.xlu0 %v193
    %v195 = vpop.xlane.xlu0 %194
    %v196 = vadd.f32 %v187, %v188
    %197 = vadd.xlane.f32.xlu0 %v196
    %v198 = vpop.xlane.xlu0 %197
    %v199 = vadd.f32 %v189, %v190
    %200 = vadd.xlane.f32.xlu0 %v199
    %v201 = vpop.xlane.xlu0 %200
    %v202 = vadd.f32 %v191, %v192
    %203 = vadd.xlane.f32.xlu0 %v202
    %v204 = vpop.xlane.xlu0 %203
    %v205 = vmul.f32 %v195, %v172
    %v206 = vmul.f32 %v198, %v172
    %v207 = vmul.f32 %v201, %v172
    %v208 = vmul.f32 %v204, %v172
    %v209 = vadd.f32 %v205, 1e-05
    %v210 = vadd.f32 %v206, 1e-05
    %v211 = vadd.f32 %v207, 1e-05
    %v212 = vadd.f32 %v208, 1e-05
    %v213 = vrsqrt.pop %v209
    %v214 = vrsqrt.pop %v210
    %v215 = vrsqrt.pop %v211
    %v216 = vrsqrt.pop %v212
    %v217 = vmul.f32 %v177, %v213
    %v218 = vmul.f32 %v178, %v213
    %v219 = vmul.f32 %v179, %v214
    %v220 = vmul.f32 %v180, %v214
    %v221 = vmul.f32 %v181, %v215
    %v222 = vmul.f32 %v182, %v215
    %v223 = vmul.f32 %v183, %v216
    %v224 = vmul.f32 %v184, %v216
    %v226 = vlaneseq
    %v227 = vshrl.u32 %v226, 7
    %v228 = vsub.s32 0, %v227
    %v229 = vrot.slane %v158, %v228
    %v230 = vlaneseq
    %v231 = vshrl.u32 %v230, 7
    %v232 = vsub.s32 1, %v231
    %v233 = vrot.slane %v158, %v232
    %v236 = vmul.f32 %v217, %v229
    %v237 = vmul.f32 %v218, %v233
    %v238 = vmul.f32 %v219, %v229
    %v239 = vmul.f32 %v220, %v233
    %v240 = vmul.f32 %v221, %v229
    %v241 = vmul.f32 %v222, %v233
    %v242 = vmul.f32 %v223, %v229
    %v243 = vmul.f32 %v224, %v233
    %v245 = vlaneseq
    %v246 = vshrl.u32 %v245, 7
    %v247 = vsub.s32 0, %v246
    %v248 = vrot.slane %v159, %v247
    %v249 = vlaneseq
    %v250 = vshrl.u32 %v249, 7
    %v251 = vsub.s32 1, %v250
    %v252 = vrot.slane %v159, %v251
    %v255 = vadd.f32 %v236, %v248
    %v256 = vadd.f32 %v237, %v252
    %v257 = vadd.f32 %v238, %v248
    %v258 = vadd.f32 %v239, %v252
    %v259 = vadd.f32 %v240, %v248
    %v260 = vadd.f32 %v241, %v252
    %v261 = vadd.f32 %v242, %v248
    %v262 = vadd.f32 %v243, %v252
    %v263 = vmax.f32 %v255, 0.0
    %v264 = vmax.f32 %v256, 0.0
    %v265 = vmax.f32 %v257, 0.0
    %v266 = vmax.f32 %v258, 0.0
    %v267 = vmax.f32 %v259, 0.0
    %v268 = vmax.f32 %v260, 0.0
    %v269 = vmax.f32 %v261, 0.0
    %v270 = vmax.f32 %v262, 0.0
    %v271 = vpack.c.bf16 %v265, %v263
    %v272 = vpack.c.bf16 %v266, %v264
    %v273 = vpack.c.bf16 %v269, %v267
    %v274 = vpack.c.bf16 %v270, %v268
    %v275 = vld [vmem:[%s6] sm:$0xf]
    %v276 = vld [vmem:[%s6 + $0x4] sm:$0xf]
    %v277 = vld [vmem:[%s6 + $0x8] sm:$0xf]
    %v278 = vld [vmem:[%s6 + $0xc] sm:$0xf]
    %v279 = vld [vmem:[%s6 + $0x10] sm:$0xf]
    %v280 = vld [vmem:[%s6 + $0x14] sm:$0xf]
    %v281 = vld [vmem:[%s6 + $0x18] sm:$0xf]
    %v282 = vld [vmem:[%s6 + $0x1c] sm:$0xf]
    %v283 = vld [vmem:[%s6 + $0x20] sm:$0xf]
    %v284 = vld [vmem:[%s6 + $0x24] sm:$0xf]
    %v285 = vld [vmem:[%s6 + $0x28] sm:$0xf]
    %v286 = vld [vmem:[%s6 + $0x2c] sm:$0xf]
    %v287 = vld [vmem:[%s6 + $0x30] sm:$0xf]
    %v288 = vld [vmem:[%s6 + $0x34] sm:$0xf]
    %v289 = vld [vmem:[%s6 + $0x38] sm:$0xf]
    %v290 = vld [vmem:[%s6 + $0x3c] sm:$0xf]
    %v291 = vld [vmem:[%s6 + $0x40] sm:$0xf]
    %v292 = vld [vmem:[%s6 + $0x44] sm:$0xf]
    %v293 = vld [vmem:[%s6 + $0x48] sm:$0xf]
    %v294 = vld [vmem:[%s6 + $0x4c] sm:$0xf]
    %v295 = vld [vmem:[%s6 + $0x50] sm:$0xf]
    %v296 = vld [vmem:[%s6 + $0x54] sm:$0xf]
    %v297 = vld [vmem:[%s6 + $0x58] sm:$0xf]
    %v298 = vld [vmem:[%s6 + $0x5c] sm:$0xf]
    %v299 = vld [vmem:[%s6 + $0x60] sm:$0xf]
    %v300 = vld [vmem:[%s6 + $0x64] sm:$0xf]
    %v301 = vld [vmem:[%s6 + $0x68] sm:$0xf]
    %v302 = vld [vmem:[%s6 + $0x6c] sm:$0xf]
    %v303 = vld [vmem:[%s6 + $0x70] sm:$0xf]
    %v304 = vld [vmem:[%s6 + $0x74] sm:$0xf]
    %v305 = vld [vmem:[%s6 + $0x78] sm:$0xf]
    %v306 = vld [vmem:[%s6 + $0x7c] sm:$0xf]
    %v307 = vld [vmem:[%s7] sm:$0x1]
    %v309 = vlaneseq
    %v310 = vshrl.u32 %v309, 7
    %v311 = vsub.s32 0, %v310
    %v312 = vrot.slane %v307, %v311
    %v346 = vunpack.c.l.b16 %v275
    %v347 = vunpack.c.l.b16 %v276
    %v348 = vunpack.c.l.b16 %v277
    %v349 = vunpack.c.l.b16 %v278
    %v350 = vunpack.c.l.b16 %v279
    %v351 = vunpack.c.l.b16 %v280
    %v352 = vunpack.c.l.b16 %v281
    %v353 = vunpack.c.l.b16 %v282
    %v354 = vunpack.c.l.b16 %v283
    %v355 = vunpack.c.l.b16 %v284
    %v356 = vunpack.c.l.b16 %v285
    %v357 = vunpack.c.l.b16 %v286
    %v358 = vunpack.c.l.b16 %v287
    %v359 = vunpack.c.l.b16 %v288
    %v360 = vunpack.c.l.b16 %v289
    %v361 = vunpack.c.l.b16 %v290
    %v362 = vunpack.c.l.b16 %v291
    %v363 = vunpack.c.l.b16 %v292
    %v364 = vunpack.c.l.b16 %v293
    %v365 = vunpack.c.l.b16 %v294
    %v366 = vunpack.c.l.b16 %v295
    %v367 = vunpack.c.l.b16 %v296
    %v368 = vunpack.c.l.b16 %v297
    %v369 = vunpack.c.l.b16 %v298
    %v370 = vunpack.c.l.b16 %v299
    %v371 = vunpack.c.l.b16 %v300
    %v372 = vunpack.c.l.b16 %v301
    %v373 = vunpack.c.l.b16 %v302
    %v374 = vunpack.c.l.b16 %v303
    %v375 = vunpack.c.l.b16 %v304
    %v376 = vunpack.c.l.b16 %v305
    %v377 = vunpack.c.l.b16 %v306
    %v378 = vpack.c.b16 %v347, %v346
    %v379 = vpack.c.b16 %v349, %v348
    %v380 = vpack.c.b16 %v351, %v350
    %v381 = vpack.c.b16 %v353, %v352
    %v382 = vpack.c.b16 %v355, %v354
    %v383 = vpack.c.b16 %v357, %v356
    %v384 = vpack.c.b16 %v359, %v358
    %v385 = vpack.c.b16 %v361, %v360
    %v386 = vpack.c.b16 %v363, %v362
    %v387 = vpack.c.b16 %v365, %v364
    %v388 = vpack.c.b16 %v367, %v366
    %v389 = vpack.c.b16 %v369, %v368
    %v390 = vpack.c.b16 %v371, %v370
    %v391 = vpack.c.b16 %v373, %v372
    %v392 = vpack.c.b16 %v375, %v374
    %v393 = vpack.c.b16 %v377, %v376
    %410 = vmatprep.subr.bf16.mxu0 0
    %411 = vmatpush1.bf16.msra.mxu0 %v378
    %412 = vmatprep.subr.bf16.mxu0 0
    %413 = vmatpush1.bf16.msra.mxu0 %v379
    %414 = vmatprep.subr.bf16.mxu0 0
    %415 = vmatpush1.bf16.msra.mxu0 %v380
    %416 = vmatprep.subr.bf16.mxu0 0
    %417 = vmatpush1.bf16.msra.mxu0 %v381
    %418 = vmatprep.subr.bf16.mxu0 0
    %419 = vmatpush1.bf16.msra.mxu0 %v382
    %420 = vmatprep.subr.bf16.mxu0 0
    %421 = vmatpush1.bf16.msra.mxu0 %v383
    %422 = vmatprep.subr.bf16.mxu0 0
    %423 = vmatpush1.bf16.msra.mxu0 %v384
    %424 = vmatprep.subr.bf16.mxu0 0
    %425 = vmatpush1.bf16.msra.mxu0 %v385
    %426 = vmatprep.subr.bf16.mxu0 0
    %427 = vmatpush1.bf16.msra.mxu0 %v386
    %428 = vmatprep.subr.bf16.mxu0 0
    %429 = vmatpush1.bf16.msra.mxu0 %v387
    %430 = vmatprep.subr.bf16.mxu0 0
    %431 = vmatpush1.bf16.msra.mxu0 %v388
    %432 = vmatprep.subr.bf16.mxu0 0
    %433 = vmatpush1.bf16.msra.mxu0 %v389
    %434 = vmatprep.subr.bf16.mxu0 0
    %435 = vmatpush1.bf16.msra.mxu0 %v390
    %436 = vmatprep.subr.bf16.mxu0 0
    %437 = vmatpush1.bf16.msra.mxu0 %v391
    %438 = vmatprep.subr.bf16.mxu0 0
    %439 = vmatpush1.bf16.msra.mxu0 %v392
    %440 = vmatprep.subr.bf16.mxu0 0
    %441 = vmatpush1.bf16.msra.mxu0 %v393
    %442 = vmatprep.mubr.bf16.mxu0 %v272
    %443 = vmatmul.mubr.bf16.gmra.mrb[0].mxu0 %v271
    %v444 = vpop.f32.mrb[0].mxu0
    %v445 = vadd.f32 %v312, %v444
    %v446 = vpop.f32.mrb[0].mxu0
    %v447 = vpop.f32.mrb[0].mxu0
    %v448 = vadd.f32 %v312, %v447
    %v449 = vpop.f32.mrb[0].mxu0
    %450 = vmatprep.mubr.bf16.mxu0 %v274
    %451 = vmatmul.mubr.bf16.gmra.mrb[0].mxu0 %v273
    %v452 = vpop.f32.mrb[0].mxu0
    %v453 = vadd.f32 %v312, %v452
    %v454 = vpop.f32.mrb[0].mxu0
    %v455 = vpop.f32.mrb[0].mxu0
    %v456 = vadd.f32 %v312, %v455
    %v457 = vpop.f32.mrb[0].mxu0
    %458 = vdwg.mxu0
    %v459 = vld [vmem:[%s8] sm:$0x1]
    %v460 = vld [vmem:[%s9] sm:$0x1]
    %vm461 = vcmask 523264
    %v462 = vsel %vm461, %v445, 0.0
    %463 = vadd.xlane.f32.xlu0 %v462
    %v464 = vpop.xlane.xlu0 %463
    %v465 = vsel %vm461, %v448, 0.0
    %466 = vadd.xlane.f32.xlu0 %v465
    %v467 = vpop.xlane.xlu0 %466
    %v468 = vsel %vm461, %v453, 0.0
    %469 = vadd.xlane.f32.xlu0 %v468
    %v470 = vpop.xlane.xlu0 %469
    %v471 = vsel %vm461, %v456, 0.0
    %472 = vadd.xlane.f32.xlu0 %v471
    %v473 = vpop.xlane.xlu0 %472
    %v474 = vrcp.pop 64.0
    %v475 = vmul.f32 %v464, %v474
    %v476 = vmul.f32 %v467, %v474
    %v477 = vmul.f32 %v470, %v474
    %v478 = vmul.f32 %v473, %v474
    %v479 = vsub.f32 %v445, %v475
    %v480 = vsub.f32 %v448, %v476
    %v481 = vsub.f32 %v453, %v477
    %v482 = vsub.f32 %v456, %v478
    %v483 = vmul.f32 %v479, %v479
    %v484 = vmul.f32 %v480, %v480
    %v485 = vmul.f32 %v481, %v481
    %v486 = vmul.f32 %v482, %v482
    %v487 = vsel %vm461, %v483, 0.0
    %488 = vadd.xlane.f32.xlu0 %v487
    %v489 = vpop.xlane.xlu0 %488
    %v490 = vsel %vm461, %v484, 0.0
    %491 = vadd.xlane.f32.xlu0 %v490
    %v492 = vpop.xlane.xlu0 %491
    %v493 = vsel %vm461, %v485, 0.0
    %494 = vadd.xlane.f32.xlu0 %v493
    %v495 = vpop.xlane.xlu0 %494
    %v496 = vsel %vm461, %v486, 0.0
    %497 = vadd.xlane.f32.xlu0 %v496
    %v498 = vpop.xlane.xlu0 %497
    %v499 = vmul.f32 %v489, %v474
    %v500 = vmul.f32 %v492, %v474
    %v501 = vmul.f32 %v495, %v474
    %v502 = vmul.f32 %v498, %v474
    %v503 = vadd.f32 %v499, 1e-05
    %v504 = vadd.f32 %v500, 1e-05
    %v505 = vadd.f32 %v501, 1e-05
    %v506 = vadd.f32 %v502, 1e-05
    %v507 = vrsqrt.pop %v503
    %v508 = vrsqrt.pop %v504
    %v509 = vrsqrt.pop %v505
    %v510 = vrsqrt.pop %v506
    %v511 = vmul.f32 %v479, %v507
    %v512 = vmul.f32 %v480, %v508
    %v513 = vmul.f32 %v481, %v509
    %v514 = vmul.f32 %v482, %v510
    %v516 = vlaneseq
    %v517 = vshrl.u32 %v516, 7
    %v518 = vsub.s32 0, %v517
    %v519 = vrot.slane %v459, %v518
    %v521 = vmul.f32 %v511, %v519
    %v522 = vmul.f32 %v512, %v519
    %v523 = vmul.f32 %v513, %v519
    %v524 = vmul.f32 %v514, %v519
    %v526 = vlaneseq
    %v527 = vshrl.u32 %v526, 7
    %v528 = vsub.s32 0, %v527
    %v529 = vrot.slane %v460, %v528
    %v531 = vadd.f32 %v521, %v529
    %v532 = vadd.f32 %v522, %v529
    %v533 = vadd.f32 %v523, %v529
    %v534 = vadd.f32 %v524, %v529
    %v535 = vmax.f32 %v531, 0.0
    %v536 = vmax.f32 %v532, 0.0
    %v537 = vmax.f32 %v533, 0.0
    %v538 = vmax.f32 %v534, 0.0
    %v539 = vpack.c.bf16 %v536, %v535
    %v540 = vpack.c.bf16 %v538, %v537
    %v541 = vld [vmem:[%s10] sm:$0xf]
    %v542 = vld [vmem:[%s10 + $0x4] sm:$0xf]
    %v543 = vld [vmem:[%s10 + $0x8] sm:$0xf]
    %v544 = vld [vmem:[%s10 + $0xc] sm:$0xf]
    %v545 = vld [vmem:[%s10 + $0x10] sm:$0xf]
    %v546 = vld [vmem:[%s10 + $0x14] sm:$0xf]
    %v547 = vld [vmem:[%s10 + $0x18] sm:$0xf]
    %v548 = vld [vmem:[%s10 + $0x1c] sm:$0xf]
    %v557 = vunpack.c.l.b16 %v541
    %v558 = vunpack.c.l.b16 %v542
    %v559 = vunpack.c.l.b16 %v543
    %v560 = vunpack.c.l.b16 %v544
    %v561 = vunpack.c.l.b16 %v545
    %v562 = vunpack.c.l.b16 %v546
    %v563 = vunpack.c.l.b16 %v547
    %v564 = vunpack.c.l.b16 %v548
    %v565 = vpack.c.b16 %v558, %v557
    %v566 = vpack.c.b16 %v560, %v559
    %v567 = vpack.c.b16 %v562, %v561
    %v568 = vpack.c.b16 %v564, %v563
    %v574 = vsel %vm461, %v539, 0
    %v577 = vsel %vm461, %v540, 0
    %579 = vmatprep.subr.bf16.mxu0 0
    %580 = vmatpush1.bf16.msra.mxu0 %v565
    %581 = vmatprep.subr.bf16.mxu0 0
    %582 = vmatpush1.bf16.msra.mxu0 %v566
    %583 = vmatprep.subr.bf16.mxu0 0
    %584 = vmatpush1.bf16.msra.mxu0 %v567
    %585 = vmatprep.subr.bf16.mxu0 0
    %586 = vmatpush1.bf16.msra.mxu0 %v568
    %587 = vmatprep.subr.bf16.mxu0 0
    %588 = vmatpush1.bf16.msra.mxu0 0
    %589 = vmatprep.subr.bf16.mxu0 0
    %590 = vmatpush1.bf16.msra.mxu0 0
    %591 = vmatprep.subr.bf16.mxu0 0
    %592 = vmatpush1.bf16.msra.mxu0 0
    %593 = vmatprep.subr.bf16.mxu0 0
    %594 = vmatpush1.bf16.msra.mxu0 0
    %595 = vmatprep.subr.bf16.mxu0 0
    %596 = vmatpush1.bf16.msra.mxu0 0
    %597 = vmatprep.subr.bf16.mxu0 0
    %598 = vmatpush1.bf16.msra.mxu0 0
    %599 = vmatprep.subr.bf16.mxu0 0
    %600 = vmatpush1.bf16.msra.mxu0 0
    %601 = vmatprep.subr.bf16.mxu0 0
    %602 = vmatpush1.bf16.msra.mxu0 0
    %603 = vmatprep.subr.bf16.mxu0 0
    %604 = vmatpush1.bf16.msra.mxu0 0
    %605 = vmatprep.subr.bf16.mxu0 0
    %606 = vmatpush1.bf16.msra.mxu0 0
    %607 = vmatprep.subr.bf16.mxu0 0
    %608 = vmatpush1.bf16.msra.mxu0 0
    %609 = vmatprep.subr.bf16.mxu0 0
    %610 = vmatpush1.bf16.msra.mxu0 0
    %611 = vmatprep.mubr.bf16.mxu0 0
    %612 = vmatmul.mubr.bf16.gmra.mrb[0].mxu0 %v574
    %v613 = vpop.f32.mrb[0].mxu0
    %v614 = vadd.f32 0.0, %v613
    %v615 = vpop.f32.mrb[0].mxu0
    %v616 = vpop.f32.mrb[0].mxu0
    %v617 = vadd.f32 0.0, %v616
    %v618 = vpop.f32.mrb[0].mxu0
    %619 = vmatprep.mubr.bf16.mxu0 0
    %620 = vmatmul.mubr.bf16.gmra.mrb[0].mxu0 %v577
    %v621 = vpop.f32.mrb[0].mxu0
    %v622 = vadd.f32 0.0, %v621
    %v623 = vpop.f32.mrb[0].mxu0
    %v624 = vpop.f32.mrb[0].mxu0
    %v625 = vadd.f32 0.0, %v624
    %v626 = vpop.f32.mrb[0].mxu0
    %627 = vdwg.mxu0
    %v628 = vld [vmem:[#allocation2] sm:$0x3]
    %v629 = vadd.f32 %v614, %v617
    %v630 = vrot.slane %v629, 4
    %v631 = vadd.f32 %v629, %v630
    %v632 = vrot.slane %v631, 2
    %v633 = vadd.f32 %v631, %v632
    %v634 = vrot.slane %v633, 1
    %v635 = vadd.f32 %v633, %v634
    %v636 = vadd.f32 %v622, %v625
    %v637 = vrot.slane %v636, 4
    %v638 = vadd.f32 %v636, %v637
    %v639 = vrot.slane %v638, 2
    %v640 = vadd.f32 %v638, %v639
    %v641 = vrot.slane %v640, 1
    %v642 = vadd.f32 %v640, %v641
    %vm645 = vcmask 1041409
    %v646 = vsel %vm645, %v642, %v635
    %v648 = vadd.f32 %v628, %v646
    %649 = vst [vmem:[#allocation2] sm:$0x3] %v648
    // Predicated region
    $region54: #{tpu_custom_call.1} parent=1 // pred_check
      %p650 = pneg %p43
    $region55: #{tpu_custom_call.1} parent=1 // pred_check_branch
      %652 = sbr.rel (%p650) target = $region57
    $region56: #{tpu_custom_call.1} parent=1 // pred_region
      %v653 = vld [vmem:[#allocation2] sm:$0x3]
      %v654 = vmul.f32 %v653, 0.0625
      %v655 = vld [vmem:[%s11] sm:$0x1]
      %v657 = vlaneseq
      %v658 = vshrl.u32 %v657, 7
      %v659 = vsub.s32 0, %v658
      %v660 = vrot.slane %v655, %v659
      %v662 = vadd.f32 %v654, %v660
      %vm663 = vcmask 1041408
      %v664 = vsel %vm663, %v662, -inf
      %665 = vmax.xlane.f32.xlu0 %v664
      %v666 = vpop.xlane.xlu0 %665
      %v667 = vsub.f32 %v662, %v666
      %v668 = vmul.f32 %v667, 1.442695
      %v669 = vpow.pop %v668
      %v670 = vsel %vm663, %v669, 0.0
      %671 = vadd.xlane.f32.xlu0 %v670
      %v672 = vpop.xlane.xlu0 %671
      %v673 = vrcp.pop %v672
      %v674 = vmul.f32 %v669, %v673
      %v675 = vld [vmem:[%s1] sm:$0x3]
      %v676 = vadd.f32 %v675, %v674
      %677 = vst [vmem:[#allocation3] sm:$0x3] %v676
    $region57: #{tpu_custom_call.1} parent=1 // pred_fallthru
      _
    // Predicated region
    $region58: #{tpu_custom_call.1} parent=1 // pred_check
      _
    $region59: #{tpu_custom_call.1} parent=1 // pred_check_branch
      %679 = sbr.rel (0) target = $region61
    $region60: #{tpu_custom_call.1} parent=1 // pred_region
      %s681 = ssub.s32 32, 32
      %682 = vsyncadd [#allocation4], %s681
      %s684 = sshll.u32 [#allocation3], 4
      %s685 = int_to_ptr.vmem [resolvable:$true] %s684
      %687 = dma.vmem_to_hbm [thread:$0]  %s685, 32, %s12, [#allocation4]
    $region61: #{tpu_custom_call.1} parent=1 // pred_fallthru
      _
    // Predicated region
    $region62: #{tpu_custom_call.1} parent=1 // pred_check
      _
    $region63: #{tpu_custom_call.1} parent=1 // pred_check_branch
      %689 = sbr.rel (0) target = $region65
    $region64: #{tpu_custom_call.1} parent=1 // pred_region
      %690 = dma.done [#allocation4], 32
    $region65: #{tpu_custom_call.1} parent=1 // pred_fallthru
      _
    %691 = vsyncpa [#allocation4], 1

</llo_original>
